<compile_context>
chip_gen: v7x
topology: tpu7x:2x2x1
jax: 0.10.0
libtpu: 0.0.40
codegen_flags: <defaults>
</compile_context>

<pallas_src>
import jax
import jax.numpy as jnp
from jax.experimental import pallas as pl
from jax.experimental.pallas import tpu as pltpu


def _choose_block_batch(batch: int) -> int:
    """Largest per-step batch block (<=8) that divides `batch`, preferring an
    even grid length so both v7x TensorCores get work."""
    divisors = [d for d in range(1, min(batch, 8) + 1) if batch % d == 0]
    even_grid = [d for d in divisors if (batch // d) % 2 == 0]
    pool = even_grid if even_grid else divisors
    return max(pool)


def _make_kernel(bt: int, hw6: int, hw7: int, hw8: int):
    hw_total = hw6 + hw7 + hw8
    off7 = hw6                  # static lane offsets => unmasked vst when aligned
    off8 = hw6 + hw7

    def kernel(c6_ref, c7_ref, c8_ref, w7_ref, b7_ref, w8_ref, b8_ref, out_ref):
        # Unrolled over the small static per-step batch block.
        for b in range(bt):
            # (1) c6 passthrough: auto-pipelined input, plain VMEM->VMEM copy.
            out_ref[b, :, 0:hw6] = c6_ref[b].astype(out_ref.dtype)

            # (2) 1x1 conv on c7: (ss, 2ss) @ (2ss, HW7), f32 MXU accumulate.
            y7 = jnp.dot(w7_ref[...], c7_ref[b],
                         preferred_element_type=jnp.float32) + b7_ref[...]
            out_ref[b, :, off7:off8] = y7.astype(out_ref.dtype)

            # (3) 1x1 conv on c8: (ss, 4ss) @ (4ss, HW8), f32 MXU accumulate.
            y8 = jnp.dot(w8_ref[...], c8_ref[b],
                         preferred_element_type=jnp.float32) + b8_ref[...]
            out_ref[b, :, off8:hw_total] = y8.astype(out_ref.dtype)

    return kernel


def pyramid_features(inputs, w7, b7, w8, b8):
    """inputs = (c5, c6, c7, c8) in NCHW. Returns (B, ss, HW6+HW7+HW8)."""
    c5, c6, c7, c8 = inputs
    del c5  # unpacked but unused, exactly as in the PyTorch forward
    batch, ss, h6, w6 = c6.shape
    hw6 = h6 * w6
    cin7, hw7 = c7.shape[1], c7.shape[2] * c7.shape[3]
    cin8, hw8 = c8.shape[1], c8.shape[2] * c8.shape[3]
    hw_total = hw6 + hw7 + hw8
    out_dtype = c6.dtype

    # Glue only: flatten spatial dims (no dtype casts — see perf notes above).
    c6_f = c6.reshape(batch, ss, hw6)
    c7_f = c7.reshape(batch, cin7, hw7)
    c8_f = c8.reshape(batch, cin8, hw8)
    b7_2d = b7.reshape(ss, 1).astype(jnp.float32)
    b8_2d = b8.reshape(ss, 1).astype(jnp.float32)

    bt = _choose_block_batch(batch)
    kernel = _make_kernel(bt, hw6, hw7, hw8)

    # TODO(synk): for unaligned production offsets (240/300) route y7||y8
    # through a lane-dense VMEM scratch + local copy instead of direct stores.
    out = pl.pallas_call(
        kernel,
        out_shape=jax.ShapeDtypeStruct((batch, ss, hw_total), out_dtype),
        grid_spec=pltpu.PrefetchScalarGridSpec(
            num_scalar_prefetch=0,
            grid=(batch // bt,),
            in_specs=[
                pl.BlockSpec((bt, ss, hw6), lambda i: (i, 0, 0)),
                pl.BlockSpec((bt, cin7, hw7), lambda i: (i, 0, 0)),
                pl.BlockSpec((bt, cin8, hw8), lambda i: (i, 0, 0)),
                # Weights/biases: constant index_map => fetched once, reused
                # across all grid steps.
                pl.BlockSpec((ss, cin7), lambda i: (0, 0)),
                pl.BlockSpec((ss, 1), lambda i: (0, 0)),
                pl.BlockSpec((ss, cin8), lambda i: (0, 0)),
                pl.BlockSpec((ss, 1), lambda i: (0, 0)),
            ],
            out_specs=pl.BlockSpec((bt, ss, hw_total), lambda i: (i, 0, 0)),
        ),
        compiler_params=pltpu.CompilerParams(
            dimension_semantics=("parallel",),
        ),
    )(c6_f, c7_f, c8_f, w7.astype(jnp.float32), b7_2d,
      w8.astype(jnp.float32), b8_2d)
    return out


def _reference(inputs, w7, b7, w8, b8):
    """Pure-JAX f32 reference mirroring the PyTorch forward."""
    c5, c6, c7, c8 = inputs
    batch, ss = c6.shape[0], c6.shape[1]
    c6_h = c6.reshape(batch, ss, -1)
    c7_h = jnp.einsum("oc,bchw->bohw", w7, c7) + b7[None, :, None, None]
    c8_h = jnp.einsum("oc,bchw->bohw", w8, c8) + b8[None, :, None, None]
    return jnp.concatenate(
        [c6_h, c7_h.reshape(batch, ss, -1), c8_h.reshape(batch, ss, -1)],
        axis=2)


if __name__ == "__main__":
    # Small shapes consistent with the module's channel/spatial pyramid
    # (c7 = 2*ss channels at half spatial, c8 = 4*ss channels at quarter
    # spatial), chosen so the concat lane offsets (0, 512, 640) are 128-aligned.
    batch = 2
    ss = 64                        # feature/channel size of c6 and conv outputs
    h6, w6s = 16, 32               # c6 spatial  -> HW6 = 512
    h7, w7s = 8, 16                # c7 spatial  -> HW7 = 128
    h8, w8s = 4, 8                 # c8 spatial  -> HW8 = 32

    key = jax.random.PRNGKey(0)
    k = jax.random.split(key, 8)
    c5 = jax.random.normal(k[0], (batch, ss // 2, 2 * h6, 2 * w6s), jnp.float32)
    c6 = jax.random.normal(k[1], (batch, ss, h6, w6s), jnp.float32)
    c7 = jax.random.normal(k[2], (batch, 2 * ss, h7, w7s), jnp.float32)
    c8 = jax.random.normal(k[3], (batch, 4 * ss, h8, w8s), jnp.float32)

    # Deterministic synthetic conv params (PyTorch Conv2d (out,in,1,1) -> (out,in)).
    w7_param = jax.random.normal(k[4], (ss, 2 * ss), jnp.float32) * 0.02
    b7_param = jax.random.normal(k[5], (ss,), jnp.float32) * 0.1
    w8_param = jax.random.normal(k[6], (ss, 4 * ss), jnp.float32) * 0.02
    b8_param = jax.random.normal(k[7], (ss,), jnp.float32) * 0.1

    inputs = (c5, c6, c7, c8)
    out = pyramid_features(inputs, w7_param, b7_param, w8_param, b8_param)
    out = jax.block_until_ready(out)

    ref = _reference(inputs, w7_param, b7_param, w8_param, b8_param)
    assert out.shape == (batch, ss, h6 * w6s + h7 * w7s + h8 * w8s), out.shape
    # f32 matmuls with f32 accumulation — tight tolerance.
    assert jnp.allclose(out, ref, rtol=1e-2, atol=1e-2), (
        float(jnp.max(jnp.abs(out - ref))))
    print("KERNEL_OK")
</pallas_src>

<mosaic_0001>
module attributes {stable_mosaic.version = 11 : i64} {
  func.func @kernel(%arg0: i32, %arg1: memref<1x64x512xf32, #tpu.memory_space<vmem>>, %arg2: memref<1x128x128xf32, #tpu.memory_space<vmem>>, %arg3: memref<1x256x32xf32, #tpu.memory_space<vmem>>, %arg4: memref<64x128xf32, #tpu.memory_space<vmem>>, %arg5: memref<64x1xf32, #tpu.memory_space<vmem>>, %arg6: memref<64x256xf32, #tpu.memory_space<vmem>>, %arg7: memref<64x1xf32, #tpu.memory_space<vmem>>, %arg8: memref<1x64x672xf32, #tpu.memory_space<vmem>>) attributes {dimension_semantics = [#tpu.dimension_semantics<parallel>], iteration_bounds = array<i64: 2>, scalar_prefetch = 0 : i64, scratch_operands = 0 : i64, tpu.core_type = #tpu.core_type<tc>, window_params = [{transform_indices = @transform_0, window_bounds = array<i64: 1, 64, 512>}, {transform_indices = @transform_1, window_bounds = array<i64: 1, 128, 128>}, {transform_indices = @transform_2, window_bounds = array<i64: 1, 256, 32>}, {pipeline_mode = #tpu.pipeline_mode<synchronous>, transform_indices = @transform_3, window_bounds = array<i64: 64, 128>}, {pipeline_mode = #tpu.pipeline_mode<synchronous>, transform_indices = @transform_4, window_bounds = array<i64: 64, 1>}, {pipeline_mode = #tpu.pipeline_mode<synchronous>, transform_indices = @transform_5, window_bounds = array<i64: 64, 256>}, {pipeline_mode = #tpu.pipeline_mode<synchronous>, transform_indices = @transform_6, window_bounds = array<i64: 64, 1>}, {transform_indices = @transform_7, window_bounds = array<i64: 1, 64, 672>}]} {
    %c0 = arith.constant 0 : index
    %c0_0 = arith.constant 0 : index
    %c0_1 = arith.constant 0 : index
    %0 = vector.load %arg1[%c0, %c0_0, %c0_1] : memref<1x64x512xf32, #tpu.memory_space<vmem>>, vector<1x64x512xf32>
    %1 = vector.shape_cast %0 : vector<1x64x512xf32> to vector<64x512xf32>
    %c0_2 = arith.constant 0 : index
    %c0_3 = arith.constant 0 : index
    %c0_4 = arith.constant 0 : index
    %2 = vector.load %arg8[%c0_2, %c0_3, %c0_4] : memref<1x64x672xf32, #tpu.memory_space<vmem>>, vector<1x64x512xf32>
    %3 = vector.shape_cast %2 : vector<1x64x512xf32> to vector<64x512xf32>
    %4 = vector.shape_cast %1 : vector<64x512xf32> to vector<1x64x512xf32>
    tpu.vector_store %arg8[%c0_2, %c0_3, %c0_4], %4 {strides = array<i32>} : memref<1x64x672xf32, #tpu.memory_space<vmem>>, vector<1x64x512xf32>,
    %c0_5 = arith.constant 0 : index
    %c0_6 = arith.constant 0 : index
    %5 = vector.load %arg4[%c0_5, %c0_6] : memref<64x128xf32, #tpu.memory_space<vmem>>, vector<64x128xf32>
    %c0_7 = arith.constant 0 : index
    %c0_8 = arith.constant 0 : index
    %c0_9 = arith.constant 0 : index
    %6 = vector.load %arg2[%c0_7, %c0_8, %c0_9] : memref<1x128x128xf32, #tpu.memory_space<vmem>>, vector<1x128x128xf32>
    %7 = vector.shape_cast %6 : vector<1x128x128xf32> to vector<128x128xf32>
    %cst = arith.constant dense<0.000000e+00> : vector<64x128xf32>
    %8 = tpu.matmul %5, %7, %cst {dimension_numbers = #tpu.dot_dimension_numbers<[1], [0], [0], [1], [0, 0, 1, 1], [], []>} : vector<64x128xf32>, vector<128x128xf32>, vector<64x128xf32> -> vector<64x128xf32>
    %c0_10 = arith.constant 0 : index
    %c0_11 = arith.constant 0 : index
    %9 = vector.load %arg5[%c0_10, %c0_11] : memref<64x1xf32, #tpu.memory_space<vmem>>, vector<64x1xf32>
    %10 = vector.broadcast %9 : vector<64x1xf32> to vector<64x128xf32>
    %11 = arith.addf %8, %10 : vector<64x128xf32>
    %c0_12 = arith.constant 0 : index
    %c0_13 = arith.constant 0 : index
    %c512 = arith.constant 512 : index
    %12 = vector.load %arg8[%c0_12, %c0_13, %c512] : memref<1x64x672xf32, #tpu.memory_space<vmem>>, vector<1x64x128xf32>
    %13 = vector.shape_cast %12 : vector<1x64x128xf32> to vector<64x128xf32>
    %14 = vector.shape_cast %11 : vector<64x128xf32> to vector<1x64x128xf32>
    tpu.vector_store %arg8[%c0_12, %c0_13, %c512], %14 {strides = array<i32>} : memref<1x64x672xf32, #tpu.memory_space<vmem>>, vector<1x64x128xf32>,
    %c0_14 = arith.constant 0 : index
    %c0_15 = arith.constant 0 : index
    %15 = vector.load %arg6[%c0_14, %c0_15] : memref<64x256xf32, #tpu.memory_space<vmem>>, vector<64x256xf32>
    %c0_16 = arith.constant 0 : index
    %c0_17 = arith.constant 0 : index
    %c0_18 = arith.constant 0 : index
    %16 = vector.load %arg3[%c0_16, %c0_17, %c0_18] : memref<1x256x32xf32, #tpu.memory_space<vmem>>, vector<1x256x32xf32>
    %17 = vector.shape_cast %16 : vector<1x256x32xf32> to vector<256x32xf32>
    %cst_19 = arith.constant dense<0.000000e+00> : vector<64x32xf32>
    %18 = tpu.matmul %15, %17, %cst_19 {dimension_numbers = #tpu.dot_dimension_numbers<[1], [0], [0], [1], [0, 0, 1, 1], [], []>} : vector<64x256xf32>, vector<256x32xf32>, vector<64x32xf32> -> vector<64x32xf32>
    %c0_20 = arith.constant 0 : index
    %c0_21 = arith.constant 0 : index
    %19 = vector.load %arg7[%c0_20, %c0_21] : memref<64x1xf32, #tpu.memory_space<vmem>>, vector<64x1xf32>
    %20 = vector.broadcast %19 : vector<64x1xf32> to vector<64x32xf32>
    %21 = arith.addf %18, %20 : vector<64x32xf32>
    %c0_22 = arith.constant 0 : index
    %c0_23 = arith.constant 0 : index
    %c640 = arith.constant 640 : index
    %22 = vector.load %arg8[%c0_22, %c0_23, %c640] : memref<1x64x672xf32, #tpu.memory_space<vmem>>, vector<1x64x32xf32>
    %23 = vector.shape_cast %22 : vector<1x64x32xf32> to vector<64x32xf32>
    %24 = vector.shape_cast %21 : vector<64x32xf32> to vector<1x64x32xf32>
    tpu.vector_store %arg8[%c0_22, %c0_23, %c640], %24 {strides = array<i32>} : memref<1x64x672xf32, #tpu.memory_space<vmem>>, vector<1x64x32xf32>,
    return
  }
  func.func @transform_0(%arg0: i32) -> (i32, i32, i32) {
    %c0_i32 = arith.constant 0 : i32
    %c0_i32_0 = arith.constant 0 : i32
    %c0_i32_1 = arith.constant 0 : i32
    return %arg0, %c0_i32, %c0_i32_0 : i32, i32, i32
  }
  func.func @transform_1(%arg0: i32) -> (i32, i32, i32) {
    %c0_i32 = arith.constant 0 : i32
    %c0_i32_0 = arith.constant 0 : i32
    %c0_i32_1 = arith.constant 0 : i32
    return %arg0, %c0_i32, %c0_i32_0 : i32, i32, i32
  }
  func.func @transform_2(%arg0: i32) -> (i32, i32, i32) {
    %c0_i32 = arith.constant 0 : i32
    %c0_i32_0 = arith.constant 0 : i32
    %c0_i32_1 = arith.constant 0 : i32
    return %arg0, %c0_i32, %c0_i32_0 : i32, i32, i32
  }
  func.func @transform_3(%arg0: i32) -> (i32, i32) {
    %c0_i32 = arith.constant 0 : i32
    %c0_i32_0 = arith.constant 0 : i32
    %c0_i32_1 = arith.constant 0 : i32
    return %c0_i32, %c0_i32_0 : i32, i32
  }
  func.func @transform_4(%arg0: i32) -> (i32, i32) {
    %c0_i32 = arith.constant 0 : i32
    %c0_i32_0 = arith.constant 0 : i32
    %c0_i32_1 = arith.constant 0 : i32
    return %c0_i32, %c0_i32_0 : i32, i32
  }
  func.func @transform_5(%arg0: i32) -> (i32, i32) {
    %c0_i32 = arith.constant 0 : i32
    %c0_i32_0 = arith.constant 0 : i32
    %c0_i32_1 = arith.constant 0 : i32
    return %c0_i32, %c0_i32_0 : i32, i32
  }
  func.func @transform_6(%arg0: i32) -> (i32, i32) {
    %c0_i32 = arith.constant 0 : i32
    %c0_i32_0 = arith.constant 0 : i32
    %c0_i32_1 = arith.constant 0 : i32
    return %c0_i32, %c0_i32_0 : i32, i32
  }
  func.func @transform_7(%arg0: i32) -> (i32, i32, i32) {
    %c0_i32 = arith.constant 0 : i32
    %c0_i32_0 = arith.constant 0 : i32
    %c0_i32_1 = arith.constant 0 : i32
    return %arg0, %c0_i32, %c0_i32_0 : i32, i32, i32
  }
}

</mosaic_0001>

<llo_original>
// kernel: tpu_custom_call.1
$region0: #{tpu_custom_call.1}
  #allocation0 [shape = 'u32[]', space=smem, size = 0x4, offset = 0x4, fixed_abs, tag = 'smem constant byte address 0x4 - core index']
  #allocation1 [shape = 'u32[144,128]{1,0:T(1,128)}', space=vmem, size = 0x12000, scoped, tag = 'internal scratch']
  %s0 = inlined_call_operand.vmem [shape: f32[2,64,512], index: 0, kind: input, shape index: {}]
  %s1 = inlined_call_operand.vmem [shape: f32[2,128,128], index: 1, kind: input, shape index: {}]
  %s2 = inlined_call_operand.vmem [shape: f32[2,256,32], index: 2, kind: input, shape index: {}]
  %s3 = inlined_call_operand.hbm [shape: f32[64,128], index: 3, kind: input, shape index: {}]
  %s4 = inlined_call_operand.vmem [shape: f32[64,1], index: 4, kind: input, shape index: {}]
  %s5 = inlined_call_operand.hbm [shape: f32[64,256], index: 5, kind: input, shape index: {}]
  %s6 = inlined_call_operand.vmem [shape: f32[64,1], index: 6, kind: input, shape index: {}]
  %s7 = inlined_call_operand.hbm [shape: f32[2,64,672], index: 7, kind: output, shape index: {}]
  %s8 = sld [smem:[#allocation0]]
  $region69: #{tpu_custom_call.1} parent=0
    _
  %s10 = ssub.s32 1, %s8
  %s11 = scalar_select 0, %s10, %s8
  $region1: #{tpu_custom_call.1} parent=0
    #allocation2 [shape = 'u8[32768]{0}', space=vmem, size = 0x8000, scoped, tag = 'input window, operand 3, single buffered']
    #allocation3 [shape = 's32[2]{0}', space=sflag, size = 0x8, scoped, tag = 'scoped memory for tpu_custom_call.1']
    #allocation4 [shape = 's32[2]{0}', space=sflag, size = 0x8, scoped, tag = 'scoped memory for tpu_custom_call.1']
    #allocation5 [shape = 'u8[65536]{0}', space=vmem, size = 0x10000, scoped, tag = 'input window, operand 5, single buffered']
    #allocation6 [shape = 's32[1]{0}', space=sflag, size = 0x4, scoped, tag = 'scoped memory for tpu_custom_call.1']
    #allocation7 [shape = 'u8[393216]{0}', space=vmem, size = 0x60000, scoped, tag = 'output window, operand 0']
    %12 = vsyncpa [#allocation3], 0
    %13 = vsyncpa [#allocation6], 0
    %14 = vsyncpa [#allocation4], 0
    %s15 = scalar_lea.sflag [#allocation4], 1
    %16 = vsyncpa %s15, 0
    loop: start=0, step=1, limit=4
    $region2: #{tpu_custom_call.1} parent=1 // loop_pre_header
      _
    $region3: #{tpu_custom_call.1} parent=1 // loop_header
      %s18 = sphi 0, %s22
      %p19 = scmp.ge.s32.totalorder %s18, 4
      %s28 = sphi 0, %s30
      %s31 = sphi 0, %s28
      %s32 = sphi 0, %s31
      %s48 = sphi 0, %s32
      %s54 = sphi 0, %s56
      %s57 = sphi 0, %s54
      %s58 = sphi 0, %s57
      %s74 = sphi 0, %s58
      %s80 = sphi 0, %s82
      %s83 = sphi 0, %s80
      %s84 = sphi 0, %s83
      %s100 = sphi 0, %s84
      %s104 = sphi 0, %s104
      %s106 = sphi 0, %s104
      %s107 = sphi 0, %s106
      %s121 = sphi 0, %s107
      %s125 = sphi 0, %s125
      %s127 = sphi 0, %s125
      %s128 = sphi 0, %s127
      %s142 = sphi 0, %s128
      %s146 = sphi 0, %s146
      %s148 = sphi 0, %s146
      %s149 = sphi 0, %s148
      %s163 = sphi 0, %s149
      %s167 = sphi 0, %s167
      %s169 = sphi 0, %s167
      %s170 = sphi 0, %s169
      %s184 = sphi 0, %s170
      %s190 = sphi 0, %s192
      %s193 = sphi 0, %s190
      %s194 = sphi 0, %s193
      %s210 = sphi 0, %s194
    $region4: #{tpu_custom_call.1} parent=1 // loop_header_branch
      %21 = sbr.rel (%p19) target = $region8
    $region5: #{tpu_custom_call.1} parent=1 // loop_body
      %s23 = ssub.s32 %s18, 1
      %s24 = ssub.s32 %s18, 2
      %s25 = sadd.s32 %s18, 1
      %s26 = ssub.s32 %s18, %s25
      %p27 = scmp.eq.s32.totalorder %s26, 0
      %s29 = sadd.s32 %s28, 1
      %s30 = scalar_select %p27, %s28, %s29
      %p33 = pneg %p27
      %p34 = scmp.eq.s32.totalorder %s18, 1
      %p35 = por %p33, %p34
      %p36 = scmp.ne.s32.totalorder %s28, %s31
      %p37 = scmp.eq.s32.totalorder %s18, 0
      %p38 = por %p36, %p37
      %p39 = scmp.ne.s32.totalorder %s28, %s31
      %p40 = scmp.eq.s32.totalorder %s23, 1
      %p41 = por %p39, %p40
      %p42 = scmp.ne.s32.totalorder %s31, %s32
      %p43 = scmp.eq.s32.totalorder %s23, 0
      %p44 = por %p42, %p43
      %p45 = scmp.ne.s32.totalorder %s31, %s32
      %p46 = scmp.eq.s32.totalorder %s24, 1
      %p47 = por %p45, %p46
      %p49 = scmp.ne.s32.totalorder %s32, %s48
      %p50 = scmp.eq.s32.totalorder %s24, 0
      %p51 = por %p49, %p50
      %s52 = ssub.s32 %s18, %s25
      %p53 = scmp.eq.s32.totalorder %s52, 0
      %s55 = sadd.s32 %s54, 1
      %s56 = scalar_select %p53, %s54, %s55
      %p59 = pneg %p53
      %p60 = scmp.eq.s32.totalorder %s18, 1
      %p61 = por %p59, %p60
      %p62 = scmp.ne.s32.totalorder %s54, %s57
      %p63 = scmp.eq.s32.totalorder %s18, 0
      %p64 = por %p62, %p63
      %p65 = scmp.ne.s32.totalorder %s54, %s57
      %p66 = scmp.eq.s32.totalorder %s23, 1
      %p67 = por %p65, %p66
      %p68 = scmp.ne.s32.totalorder %s57, %s58
      %p69 = scmp.eq.s32.totalorder %s23, 0
      %p70 = por %p68, %p69
      %p71 = scmp.ne.s32.totalorder %s57, %s58
      %p72 = scmp.eq.s32.totalorder %s24, 1
      %p73 = por %p71, %p72
      %p75 = scmp.ne.s32.totalorder %s58, %s74
      %p76 = scmp.eq.s32.totalorder %s24, 0
      %p77 = por %p75, %p76
      %s78 = ssub.s32 %s18, %s25
      %p79 = scmp.eq.s32.totalorder %s78, 0
      %s81 = sadd.s32 %s80, 1
      %s82 = scalar_select %p79, %s80, %s81
      %p85 = pneg %p79
      %p86 = scmp.eq.s32.totalorder %s18, 1
      %p87 = por %p85, %p86
      %p88 = scmp.ne.s32.totalorder %s80, %s83
      %p89 = scmp.eq.s32.totalorder %s18, 0
      %p90 = por %p88, %p89
      %p91 = scmp.ne.s32.totalorder %s80, %s83
      %p92 = scmp.eq.s32.totalorder %s23, 1
      %p93 = por %p91, %p92
      %p94 = scmp.ne.s32.totalorder %s83, %s84
      %p95 = scmp.eq.s32.totalorder %s23, 0
      %p96 = por %p94, %p95
      %p97 = scmp.ne.s32.totalorder %s83, %s84
      %p98 = scmp.eq.s32.totalorder %s24, 1
      %p99 = por %p97, %p98
      %p101 = scmp.ne.s32.totalorder %s84, %s100
      %p102 = scmp.eq.s32.totalorder %s24, 0
      %p103 = por %p101, %p102
      %s105 = sadd.s32 %s104, 1
      %p108 = scmp.eq.s32.totalorder %s18, 1
      %p109 = scmp.ne.s32.totalorder %s104, %s106
      %p110 = scmp.eq.s32.totalorder %s18, 0
      %p111 = por %p109, %p110
      %p112 = scmp.ne.s32.totalorder %s104, %s106
      %p113 = scmp.eq.s32.totalorder %s23, 1
      %p114 = por %p112, %p113
      %p115 = scmp.ne.s32.totalorder %s106, %s107
      %p116 = scmp.eq.s32.totalorder %s23, 0
      %p117 = por %p115, %p116
      %p118 = scmp.ne.s32.totalorder %s106, %s107
      %p119 = scmp.eq.s32.totalorder %s24, 1
      %p120 = por %p118, %p119
      %p122 = scmp.ne.s32.totalorder %s107, %s121
      %p123 = scmp.eq.s32.totalorder %s24, 0
      %p124 = por %p122, %p123
      %s126 = sadd.s32 %s125, 1
      %p129 = scmp.eq.s32.totalorder %s18, 1
      %p130 = scmp.ne.s32.totalorder %s125, %s127
      %p131 = scmp.eq.s32.totalorder %s18, 0
      %p132 = por %p130, %p131
      %p133 = scmp.ne.s32.totalorder %s125, %s127
      %p134 = scmp.eq.s32.totalorder %s23, 1
      %p135 = por %p133, %p134
      %p136 = scmp.ne.s32.totalorder %s127, %s128
      %p137 = scmp.eq.s32.totalorder %s23, 0
      %p138 = por %p136, %p137
      %p139 = scmp.ne.s32.totalorder %s127, %s128
      %p140 = scmp.eq.s32.totalorder %s24, 1
      %p141 = por %p139, %p140
      %p143 = scmp.ne.s32.totalorder %s128, %s142
      %p144 = scmp.eq.s32.totalorder %s24, 0
      %p145 = por %p143, %p144
      %s147 = sadd.s32 %s146, 1
      %p150 = scmp.eq.s32.totalorder %s18, 1
      %p151 = scmp.ne.s32.totalorder %s146, %s148
      %p152 = scmp.eq.s32.totalorder %s18, 0
      %p153 = por %p151, %p152
      %p154 = scmp.ne.s32.totalorder %s146, %s148
      %p155 = scmp.eq.s32.totalorder %s23, 1
      %p156 = por %p154, %p155
      %p157 = scmp.ne.s32.totalorder %s148, %s149
      %p158 = scmp.eq.s32.totalorder %s23, 0
      %p159 = por %p157, %p158
      %p160 = scmp.ne.s32.totalorder %s148, %s149
      %p161 = scmp.eq.s32.totalorder %s24, 1
      %p162 = por %p160, %p161
      %p164 = scmp.ne.s32.totalorder %s149, %s163
      %p165 = scmp.eq.s32.totalorder %s24, 0
      %p166 = por %p164, %p165
      %s168 = sadd.s32 %s167, 1
      %p171 = scmp.eq.s32.totalorder %s18, 1
      %p172 = scmp.ne.s32.totalorder %s167, %s169
      %p173 = scmp.eq.s32.totalorder %s18, 0
      %p174 = por %p172, %p173
      %p175 = scmp.ne.s32.totalorder %s167, %s169
      %p176 = scmp.eq.s32.totalorder %s23, 1
      %p177 = por %p175, %p176
      %p178 = scmp.ne.s32.totalorder %s169, %s170
      %p179 = scmp.eq.s32.totalorder %s23, 0
      %p180 = por %p178, %p179
      %p181 = scmp.ne.s32.totalorder %s169, %s170
      %p182 = scmp.eq.s32.totalorder %s24, 1
      %p183 = por %p181, %p182
      %p185 = scmp.ne.s32.totalorder %s170, %s184
      %p186 = scmp.eq.s32.totalorder %s24, 0
      %p187 = por %p185, %p186
      %s188 = ssub.s32 %s18, %s25
      %p189 = scmp.eq.s32.totalorder %s188, 0
      %s191 = sadd.s32 %s190, 1
      %s192 = scalar_select %p189, %s190, %s191
      %p195 = pneg %p189
      %p196 = scmp.eq.s32.totalorder %s18, 1
      %p197 = por %p195, %p196
      %p198 = scmp.ne.s32.totalorder %s190, %s193
      %p199 = scmp.eq.s32.totalorder %s18, 0
      %p200 = por %p198, %p199
      %p201 = scmp.ne.s32.totalorder %s190, %s193
      %p202 = scmp.eq.s32.totalorder %s23, 1
      %p203 = por %p201, %p202
      %p204 = scmp.ne.s32.totalorder %s193, %s194
      %p205 = scmp.eq.s32.totalorder %s23, 0
      %p206 = por %p204, %p205
      %p207 = scmp.ne.s32.totalorder %s193, %s194
      %p208 = scmp.eq.s32.totalorder %s24, 1
      %p209 = por %p207, %p208
      %p211 = scmp.ne.s32.totalorder %s194, %s210
      %p212 = scmp.eq.s32.totalorder %s24, 0
      %p213 = por %p211, %p212
      %p214 = scmp.le.s32.totalorder 1, %s18
      %p215 = scmp.lt.s32.totalorder %s18, 3
      %p216 = pnand %p214, %p215
      %p217 = pneg %p216
      // Predicated region
      $region9: #{tpu_custom_call.1} parent=5 // pred_check
        _
      $region10: #{tpu_custom_call.1} parent=5 // pred_check_branch
        %219 = sbr.rel (%p216) target = $region12
      $region11: #{tpu_custom_call.1} parent=5 // pred_region
        %s220 = ssub.s32 %s18, 1
        // Predicated region
        $region13: #{tpu_custom_call.1} parent=11 // pred_check
          %p221 = pneg %p117
        $region14: #{tpu_custom_call.1} parent=11 // pred_check_branch
          %223 = sbr.rel (%p221) target = $region16
        $region15: #{tpu_custom_call.1} parent=11 // pred_region
          %s225 = ssub.s32 1024, 1024
          %226 = vsyncadd [#allocation3], %s225
          %s227 = sshll.u32 [#allocation2], 4
          %s228 = int_to_ptr.vmem [resolvable:$true] %s227
          %233 = dma.hbm_to_vmem [thread:$0]  %s3, 1024, %s228, [#allocation3], 128, 128, 8
        $region16: #{tpu_custom_call.1} parent=11 // pred_fallthru
          _
        // Predicated region
        $region17: #{tpu_custom_call.1} parent=11 // pred_check
          %p234 = pneg %p138
        $region18: #{tpu_custom_call.1} parent=11 // pred_check_branch
          %236 = sbr.rel (%p234) target = $region20
        $region19: #{tpu_custom_call.1} parent=11 // pred_region
          _
        $region20: #{tpu_custom_call.1} parent=11 // pred_fallthru
          _
        // Predicated region
        $region21: #{tpu_custom_call.1} parent=11 // pred_check
          %p237 = pneg %p159
        $region22: #{tpu_custom_call.1} parent=11 // pred_check_branch
          %239 = sbr.rel (%p237) target = $region24
        $region23: #{tpu_custom_call.1} parent=11 // pred_region
          %s241 = ssub.s32 2048, 2048
          %242 = vsyncadd [#allocation6], %s241
          %s243 = sshll.u32 [#allocation5], 4
          %s244 = int_to_ptr.vmem [resolvable:$true] %s243
          %249 = dma.hbm_to_vmem [thread:$0]  %s5, 2048, %s244, [#allocation6], 256, 256, 16
        $region24: #{tpu_custom_call.1} parent=11 // pred_fallthru
          _
        // Predicated region
        $region25: #{tpu_custom_call.1} parent=11 // pred_check
          %p250 = pneg %p180
        $region26: #{tpu_custom_call.1} parent=11 // pred_check_branch
          %252 = sbr.rel (%p250) target = $region28
        $region27: #{tpu_custom_call.1} parent=11 // pred_region
          _
        $region28: #{tpu_custom_call.1} parent=11 // pred_fallthru
          _
      $region12: #{tpu_custom_call.1} parent=5 // pred_fallthru
        _
      %p253 = scmp.lt.s32.totalorder %s18, 2
      // Predicated region
      $region29: #{tpu_custom_call.1} parent=5 // pred_check
        %p254 = pneg %p253
      $region30: #{tpu_custom_call.1} parent=5 // pred_check_branch
        %256 = sbr.rel (%p254) target = $region32
      $region31: #{tpu_custom_call.1} parent=5 // pred_region
        // Predicated region
        $region33: #{tpu_custom_call.1} parent=31 // pred_check
          %p257 = pneg %p38
        $region34: #{tpu_custom_call.1} parent=31 // pred_check_branch
          %259 = sbr.rel (%p257) target = $region36
        $region35: #{tpu_custom_call.1} parent=31 // pred_region
          %p260 = scmp.lt.s32.totalorder %s18, 1
          %s261 = scalar_select %p260, %s18, 1
          %s262 = smul.addr %s261, 32
          %s263 = smul.addr %s262, 8
          %s264 = scalar_lea.vmem %s0, %s263
        $region36: #{tpu_custom_call.1} parent=31 // pred_fallthru
          _
        // Predicated region
        $region37: #{tpu_custom_call.1} parent=31 // pred_check
          %p265 = pneg %p64
        $region38: #{tpu_custom_call.1} parent=31 // pred_check_branch
          %267 = sbr.rel (%p265) target = $region40
        $region39: #{tpu_custom_call.1} parent=31 // pred_region
          %p268 = scmp.lt.s32.totalorder %s18, 1
          %s269 = scalar_select %p268, %s18, 1
          %s270 = smul.addr %s269, 16
          %s271 = smul.addr %s270, 8
          %s272 = scalar_lea.vmem %s1, %s271
        $region40: #{tpu_custom_call.1} parent=31 // pred_fallthru
          _
        // Predicated region
        $region41: #{tpu_custom_call.1} parent=31 // pred_check
          %p273 = pneg %p90
        $region42: #{tpu_custom_call.1} parent=31 // pred_check_branch
          %275 = sbr.rel (%p273) target = $region44
        $region43: #{tpu_custom_call.1} parent=31 // pred_region
          %p276 = scmp.lt.s32.totalorder %s18, 1
          %s277 = scalar_select %p276, %s18, 1
          %s278 = smul.addr %s277, 32
          %s279 = smul.addr %s278, 8
          %s280 = scalar_lea.vmem %s2, %s279
        $region44: #{tpu_custom_call.1} parent=31 // pred_fallthru
          _
      $region32: #{tpu_custom_call.1} parent=5 // pred_fallthru
        _
      %p281 = scmp.le.s32.totalorder 1, %s18
      %p282 = scmp.lt.s32.totalorder %s18, 3
      %p283 = pnand %p281, %p282
      %p284 = pneg %p283
      // Predicated region
      $region45: #{tpu_custom_call.1} parent=5 // pred_check
        _
      $region46: #{tpu_custom_call.1} parent=5 // pred_check_branch
        %286 = sbr.rel (%p283) target = $region48
      $region47: #{tpu_custom_call.1} parent=5 // pred_region
        %s287 = ssub.s32 %s18, 1
        // Predicated region
        $region49: #{tpu_custom_call.1} parent=47 // pred_check
          %p288 = pneg %p117
        $region50: #{tpu_custom_call.1} parent=47 // pred_check_branch
          %290 = sbr.rel (%p288) target = $region52
        $region51: #{tpu_custom_call.1} parent=47 // pred_region
          %291 = dma.done [#allocation3], 1024
        $region52: #{tpu_custom_call.1} parent=47 // pred_fallthru
          _
        // Predicated region
        $region53: #{tpu_custom_call.1} parent=47 // pred_check
          %p292 = pneg %p159
        $region54: #{tpu_custom_call.1} parent=47 // pred_check_branch
          %294 = sbr.rel (%p292) target = $region56
        $region55: #{tpu_custom_call.1} parent=47 // pred_region
          %295 = dma.done [#allocation6], 2048
        $region56: #{tpu_custom_call.1} parent=47 // pred_fallthru
          _
        %p296 = scmp.lt.s32.totalorder %s23, 1
        %s297 = scalar_select %p296, %s23, 1
        %s298 = smul.addr %s297, 32
        %s299 = smul.addr %s298, 8
        %s300 = scalar_lea.vmem %s0, %s299
        %p301 = pneg %p44
        %p302 = pneg %p41
        %p303 = scmp.lt.s32.totalorder %s23, 1
        %s304 = scalar_select %p303, %s23, 1
        %s305 = smul.addr %s304, 16
        %s306 = smul.addr %s305, 8
        %s307 = scalar_lea.vmem %s1, %s306
        %p308 = pneg %p70
        %p309 = pneg %p67
        %p310 = scmp.lt.s32.totalorder %s23, 1
        %s311 = scalar_select %p310, %s23, 1
        %s312 = smul.addr %s311, 32
        %s313 = smul.addr %s312, 8
        %s314 = scalar_lea.vmem %s2, %s313
        %p315 = pneg %p96
        %p316 = pneg %p93
        %p317 = pneg %p117
        %p318 = pneg %p114
        %p319 = pneg %p138
        %p320 = pneg %p135
        %p321 = pneg %p159
        %p322 = pneg %p156
        %p323 = pneg %p180
        %p324 = pneg %p177
        %p325 = pneg %p206
        %p326 = pneg %p203
        %s327 = sand.u32 %s193, 1
        %s328 = scalar_lea.sflag [#allocation4], %s327
        %s329 = sand.u32 %s193, 1
        %s330 = smul.addr %s329, 384
        %s331 = scalar_lea.vmem [#allocation7], %s330
        %p332 = scmp.lt.s32.totalorder %s23, 1
        %s333 = scalar_select %p332, %s23, 1
        %s334 = smul.addr %s333, 32
        %s335 = smul.addr %s334, 8
        %s336 = scalar_lea.vmem %s0, %s335
        %p337 = scmp.lt.s32.totalorder %s23, 1
        %s338 = scalar_select %p337, %s23, 1
        %s339 = smul.addr %s338, 16
        %s340 = smul.addr %s339, 8
        %s341 = scalar_lea.vmem %s1, %s340
        %p342 = scmp.lt.s32.totalorder %s23, 1
        %s343 = scalar_select %p342, %s23, 1
        %s344 = smul.addr %s343, 32
        %s345 = smul.addr %s344, 8
        %s346 = scalar_lea.vmem %s2, %s345
        %v347 = vld [vmem:[%s336] sm:$0xff]
        %v348 = vld [vmem:[%s336 + $0x8] sm:$0xff]
        %v349 = vld [vmem:[%s336 + $0x10] sm:$0xff]
        %v350 = vld [vmem:[%s336 + $0x18] sm:$0xff]
        %v351 = vld [vmem:[%s336 + $0x20] sm:$0xff]
        %v352 = vld [vmem:[%s336 + $0x28] sm:$0xff]
        %v353 = vld [vmem:[%s336 + $0x30] sm:$0xff]
        %v354 = vld [vmem:[%s336 + $0x38] sm:$0xff]
        %v355 = vld [vmem:[%s336 + $0x40] sm:$0xff]
        %v356 = vld [vmem:[%s336 + $0x48] sm:$0xff]
        %v357 = vld [vmem:[%s336 + $0x50] sm:$0xff]
        %v358 = vld [vmem:[%s336 + $0x58] sm:$0xff]
        %v359 = vld [vmem:[%s336 + $0x60] sm:$0xff]
        %v360 = vld [vmem:[%s336 + $0x68] sm:$0xff]
        %v361 = vld [vmem:[%s336 + $0x70] sm:$0xff]
        %v362 = vld [vmem:[%s336 + $0x78] sm:$0xff]
        %v363 = vld [vmem:[%s336 + $0x80] sm:$0xff]
        %v364 = vld [vmem:[%s336 + $0x88] sm:$0xff]
        %v365 = vld [vmem:[%s336 + $0x90] sm:$0xff]
        %v366 = vld [vmem:[%s336 + $0x98] sm:$0xff]
        %v367 = vld [vmem:[%s336 + $0xa0] sm:$0xff]
        %v368 = vld [vmem:[%s336 + $0xa8] sm:$0xff]
        %v369 = vld [vmem:[%s336 + $0xb0] sm:$0xff]
        %v370 = vld [vmem:[%s336 + $0xb8] sm:$0xff]
        %v371 = vld [vmem:[%s336 + $0xc0] sm:$0xff]
        %v372 = vld [vmem:[%s336 + $0xc8] sm:$0xff]
        %v373 = vld [vmem:[%s336 + $0xd0] sm:$0xff]
        %v374 = vld [vmem:[%s336 + $0xd8] sm:$0xff]
        %v375 = vld [vmem:[%s336 + $0xe0] sm:$0xff]
        %v376 = vld [vmem:[%s336 + $0xe8] sm:$0xff]
        %v377 = vld [vmem:[%s336 + $0xf0] sm:$0xff]
        %v378 = vld [vmem:[%s336 + $0xf8] sm:$0xff]
        %379 = vst [vmem:[%s331] sm:$0xff] %v347
        %380 = vst [vmem:[%s331 + $0x8] sm:$0xff] %v348
        %381 = vst [vmem:[%s331 + $0x10] sm:$0xff] %v349
        %382 = vst [vmem:[%s331 + $0x18] sm:$0xff] %v350
        %383 = vst [vmem:[%s331 + $0x30] sm:$0xff] %v351
        %384 = vst [vmem:[%s331 + $0x38] sm:$0xff] %v352
        %385 = vst [vmem:[%s331 + $0x40] sm:$0xff] %v353
        %386 = vst [vmem:[%s331 + $0x48] sm:$0xff] %v354
        %387 = vst [vmem:[%s331 + $0x60] sm:$0xff] %v355
        %388 = vst [vmem:[%s331 + $0x68] sm:$0xff] %v356
        %389 = vst [vmem:[%s331 + $0x70] sm:$0xff] %v357
        %390 = vst [vmem:[%s331 + $0x78] sm:$0xff] %v358
        %391 = vst [vmem:[%s331 + $0x90] sm:$0xff] %v359
        %392 = vst [vmem:[%s331 + $0x98] sm:$0xff] %v360
        %393 = vst [vmem:[%s331 + $0xa0] sm:$0xff] %v361
        %394 = vst [vmem:[%s331 + $0xa8] sm:$0xff] %v362
        %395 = vst [vmem:[%s331 + $0xc0] sm:$0xff] %v363
        %396 = vst [vmem:[%s331 + $0xc8] sm:$0xff] %v364
        %397 = vst [vmem:[%s331 + $0xd0] sm:$0xff] %v365
        %398 = vst [vmem:[%s331 + $0xd8] sm:$0xff] %v366
        %399 = vst [vmem:[%s331 + $0xf0] sm:$0xff] %v367
        %400 = vst [vmem:[%s331 + $0xf8] sm:$0xff] %v368
        %401 = vst [vmem:[%s331 + $0x100] sm:$0xff] %v369
        %402 = vst [vmem:[%s331 + $0x108] sm:$0xff] %v370
        %403 = vst [vmem:[%s331 + $0x120] sm:$0xff] %v371
        %404 = vst [vmem:[%s331 + $0x128] sm:$0xff] %v372
        %405 = vst [vmem:[%s331 + $0x130] sm:$0xff] %v373
        %406 = vst [vmem:[%s331 + $0x138] sm:$0xff] %v374
        %407 = vst [vmem:[%s331 + $0x150] sm:$0xff] %v375
        %408 = vst [vmem:[%s331 + $0x158] sm:$0xff] %v376
        %409 = vst [vmem:[%s331 + $0x160] sm:$0xff] %v377
        %410 = vst [vmem:[%s331 + $0x168] sm:$0xff] %v378
        %v411 = vld [vmem:[#allocation2] sm:$0xff]
        %v412 = vld [vmem:[#allocation2 + $0x8] sm:$0xff]
        %v413 = vld [vmem:[#allocation2 + $0x10] sm:$0xff]
        %v414 = vld [vmem:[#allocation2 + $0x18] sm:$0xff]
        %v415 = vld [vmem:[#allocation2 + $0x20] sm:$0xff]
        %v416 = vld [vmem:[#allocation2 + $0x28] sm:$0xff]
        %v417 = vld [vmem:[#allocation2 + $0x30] sm:$0xff]
        %v418 = vld [vmem:[#allocation2 + $0x38] sm:$0xff]
        %v419 = vld [vmem:[%s341] sm:$0xff]
        %v420 = vld [vmem:[%s341 + $0x8] sm:$0xff]
        %v421 = vld [vmem:[%s341 + $0x10] sm:$0xff]
        %v422 = vld [vmem:[%s341 + $0x18] sm:$0xff]
        %v423 = vld [vmem:[%s341 + $0x20] sm:$0xff]
        %v424 = vld [vmem:[%s341 + $0x28] sm:$0xff]
        %v425 = vld [vmem:[%s341 + $0x30] sm:$0xff]
        %v426 = vld [vmem:[%s341 + $0x38] sm:$0xff]
        %v427 = vld [vmem:[%s341 + $0x40] sm:$0xff]
        %v428 = vld [vmem:[%s341 + $0x48] sm:$0xff]
        %v429 = vld [vmem:[%s341 + $0x50] sm:$0xff]
        %v430 = vld [vmem:[%s341 + $0x58] sm:$0xff]
        %v431 = vld [vmem:[%s341 + $0x60] sm:$0xff]
        %v432 = vld [vmem:[%s341 + $0x68] sm:$0xff]
        %v433 = vld [vmem:[%s341 + $0x70] sm:$0xff]
        %v434 = vld [vmem:[%s341 + $0x78] sm:$0xff]
        %v435 = vld [vmem:[%s4] sm:$0xff]
        %v436 = vld [vmem:[%s4 + $0x8] sm:$0xff]
        %v437 = vld [vmem:[%s4 + $0x10] sm:$0xff]
        %v438 = vld [vmem:[%s4 + $0x18] sm:$0xff]
        %v439 = vld [vmem:[%s4 + $0x20] sm:$0xff]
        %v440 = vld [vmem:[%s4 + $0x28] sm:$0xff]
        %v441 = vld [vmem:[%s4 + $0x30] sm:$0xff]
        %v442 = vld [vmem:[%s4 + $0x38] sm:$0xff]
        %444 = vset.pattern.permute.xlu0 0
        %445 = vperm.xlu0 %444, %v435
        %v446 = vpop.permute.xlu0 %445
        %449 = vset.pattern.permute.xlu0 0
        %450 = vperm.xlu0 %449, %v436
        %v451 = vpop.permute.xlu0 %450
        %454 = vset.pattern.permute.xlu0 0
        %455 = vperm.xlu0 %454, %v437
        %v456 = vpop.permute.xlu0 %455
        %459 = vset.pattern.permute.xlu0 0
        %460 = vperm.xlu0 %459, %v438
        %v461 = vpop.permute.xlu0 %460
        %464 = vset.pattern.permute.xlu0 0
        %465 = vperm.xlu0 %464, %v439
        %v466 = vpop.permute.xlu0 %465
        %469 = vset.pattern.permute.xlu0 0
        %470 = vperm.xlu0 %469, %v440
        %v471 = vpop.permute.xlu0 %470
        %474 = vset.pattern.permute.xlu0 0
        %475 = vperm.xlu0 %474, %v441
        %v476 = vpop.permute.xlu0 %475
        %479 = vset.pattern.permute.xlu0 0
        %480 = vperm.xlu0 %479, %v442
        %v481 = vpop.permute.xlu0 %480
        %483 = vmatprep.subr.mxu0 0.0
        %484 = vmatpush1.msra.mxu0 %v419
        %485 = vmatprep.subr.mxu0 0.0
        %486 = vmatpush1.msra.mxu0 %v420
        %487 = vmatprep.subr.mxu0 0.0
        %488 = vmatpush1.msra.mxu0 %v421
        %489 = vmatprep.subr.mxu0 0.0
        %490 = vmatpush1.msra.mxu0 %v422
        %491 = vmatprep.subr.mxu0 0.0
        %492 = vmatpush1.msra.mxu0 %v423
        %493 = vmatprep.subr.mxu0 0.0
        %494 = vmatpush1.msra.mxu0 %v424
        %495 = vmatprep.subr.mxu0 0.0
        %496 = vmatpush1.msra.mxu0 %v425
        %497 = vmatprep.subr.mxu0 0.0
        %498 = vmatpush1.msra.mxu0 %v426
        %499 = vmatprep.subr.mxu0 0.0
        %500 = vmatpush1.msra.mxu0 %v427
        %501 = vmatprep.subr.mxu0 0.0
        %502 = vmatpush1.msra.mxu0 %v428
        %503 = vmatprep.subr.mxu0 0.0
        %504 = vmatpush1.msra.mxu0 %v429
        %505 = vmatprep.subr.mxu0 0.0
        %506 = vmatpush1.msra.mxu0 %v430
        %507 = vmatprep.subr.mxu0 0.0
        %508 = vmatpush1.msra.mxu0 %v431
        %509 = vmatprep.subr.mxu0 0.0
        %510 = vmatpush1.msra.mxu0 %v432
        %511 = vmatprep.subr.mxu0 0.0
        %512 = vmatpush1.msra.mxu0 %v433
        %513 = vmatprep.subr.mxu0 0.0
        %514 = vmatpush1.msra.mxu0 %v434
        %515 = vmatprep.subr.mxu0 0.0
        %516 = vmatpush1.msra.mxu0 0.0
        %517 = vmatprep.subr.mxu0 0.0
        %518 = vmatpush1.msra.mxu0 0.0
        %519 = vmatprep.subr.mxu0 0.0
        %520 = vmatpush1.msra.mxu0 0.0
        %521 = vmatprep.subr.mxu0 0.0
        %522 = vmatpush1.msra.mxu0 0.0
        %523 = vmatprep.subr.mxu0 0.0
        %524 = vmatpush1.msra.mxu0 0.0
        %525 = vmatprep.subr.mxu0 0.0
        %526 = vmatpush1.msra.mxu0 0.0
        %527 = vmatprep.subr.mxu0 0.0
        %528 = vmatpush1.msra.mxu0 0.0
        %529 = vmatprep.subr.mxu0 0.0
        %530 = vmatpush1.msra.mxu0 0.0
        %531 = vmatprep.subr.mxu0 0.0
        %532 = vmatpush1.msra.mxu0 0.0
        %533 = vmatprep.subr.mxu0 0.0
        %534 = vmatpush1.msra.mxu0 0.0
        %535 = vmatprep.subr.mxu0 0.0
        %536 = vmatpush1.msra.mxu0 0.0
        %537 = vmatprep.subr.mxu0 0.0
        %538 = vmatpush1.msra.mxu0 0.0
        %539 = vmatprep.subr.mxu0 0.0
        %540 = vmatpush1.msra.mxu0 0.0
        %541 = vmatprep.subr.mxu0 0.0
        %542 = vmatpush1.msra.mxu0 0.0
        %543 = vmatprep.subr.mxu0 0.0
        %544 = vmatpush1.msra.mxu0 0.0
        %545 = vmatprep.subr.mxu0 0.0
        %546 = vmatpush1.msra.mxu0 0.0
        %547 = vmatprep.mubr.f32.mxu0 0.0
        %548 = vmatmul.mubr.f32.gmra.mrb[0].mxu0 %v411
        %v549 = vpop.f32.mrb[0].mxu0
        %v550 = vadd.f32 %v446, %v549
        %v551 = vpop.f32.mrb[0].mxu0
        %552 = vmatprep.mubr.f32.mxu0 0.0
        %553 = vmatmul.mubr.f32.gmra.mrb[0].mxu0 %v412
        %v554 = vpop.f32.mrb[0].mxu0
        %v555 = vadd.f32 %v451, %v554
        %v556 = vpop.f32.mrb[0].mxu0
        %557 = vmatprep.mubr.f32.mxu0 0.0
        %558 = vmatmul.mubr.f32.gmra.mrb[0].mxu0 %v413
        %v559 = vpop.f32.mrb[0].mxu0
        %v560 = vadd.f32 %v456, %v559
        %v561 = vpop.f32.mrb[0].mxu0
        %562 = vmatprep.mubr.f32.mxu0 0.0
        %563 = vmatmul.mubr.f32.gmra.mrb[0].mxu0 %v414
        %v564 = vpop.f32.mrb[0].mxu0
        %v565 = vadd.f32 %v461, %v564
        %v566 = vpop.f32.mrb[0].mxu0
        %567 = vmatprep.mubr.f32.mxu0 0.0
        %568 = vmatmul.mubr.f32.gmra.mrb[0].mxu0 %v415
        %v569 = vpop.f32.mrb[0].mxu0
        %v570 = vadd.f32 %v466, %v569
        %v571 = vpop.f32.mrb[0].mxu0
        %572 = vmatprep.mubr.f32.mxu0 0.0
        %573 = vmatmul.mubr.f32.gmra.mrb[0].mxu0 %v416
        %v574 = vpop.f32.mrb[0].mxu0
        %v575 = vadd.f32 %v471, %v574
        %v576 = vpop.f32.mrb[0].mxu0
        %577 = vmatprep.mubr.f32.mxu0 0.0
        %578 = vmatmul.mubr.f32.gmra.mrb[0].mxu0 %v417
        %v579 = vpop.f32.mrb[0].mxu0
        %v580 = vadd.f32 %v476, %v579
        %v581 = vpop.f32.mrb[0].mxu0
        %582 = vmatprep.mubr.f32.mxu0 0.0
        %583 = vmatmul.mubr.f32.gmra.mrb[0].mxu0 %v418
        %v584 = vpop.f32.mrb[0].mxu0
        %v585 = vadd.f32 %v481, %v584
        %v586 = vpop.f32.mrb[0].mxu0
        %587 = vdwg.mxu0
        %588 = vst [vmem:[%s331 + $0x20] sm:$0xff] %v550
        %589 = vst [vmem:[%s331 + $0x50] sm:$0xff] %v555
        %590 = vst [vmem:[%s331 + $0x80] sm:$0xff] %v560
        %591 = vst [vmem:[%s331 + $0xb0] sm:$0xff] %v565
        %592 = vst [vmem:[%s331 + $0xe0] sm:$0xff] %v570
        %593 = vst [vmem:[%s331 + $0x110] sm:$0xff] %v575
        %594 = vst [vmem:[%s331 + $0x140] sm:$0xff] %v580
        %595 = vst [vmem:[%s331 + $0x170] sm:$0xff] %v585
        %v596 = vld [vmem:[#allocation5] sm:$0xff]
        %v597 = vld [vmem:[#allocation5 + $0x8] sm:$0xff]
        %v598 = vld [vmem:[#allocation5 + $0x10] sm:$0xff]
        %v599 = vld [vmem:[#allocation5 + $0x18] sm:$0xff]
        %v600 = vld [vmem:[#allocation5 + $0x20] sm:$0xff]
        %v601 = vld [vmem:[#allocation5 + $0x28] sm:$0xff]
        %v602 = vld [vmem:[#allocation5 + $0x30] sm:$0xff]
        %v603 = vld [vmem:[#allocation5 + $0x38] sm:$0xff]
        %v604 = vld [vmem:[#allocation5 + $0x40] sm:$0xff]
        %v605 = vld [vmem:[#allocation5 + $0x48] sm:$0xff]
        %v606 = vld [vmem:[#allocation5 + $0x50] sm:$0xff]
        %v607 = vld [vmem:[#allocation5 + $0x58] sm:$0xff]
        %v608 = vld [vmem:[#allocation5 + $0x60] sm:$0xff]
        %v609 = vld [vmem:[#allocation5 + $0x68] sm:$0xff]
        %v610 = vld [vmem:[#allocation5 + $0x70] sm:$0xff]
        %v611 = vld [vmem:[#allocation5 + $0x78] sm:$0xff]
        %v612 = vld [vmem:[%s346] sm:$0xff]
        %v613 = vld [vmem:[%s346 + $0x8] sm:$0xff]
        %v614 = vld [vmem:[%s346 + $0x10] sm:$0xff]
        %v615 = vld [vmem:[%s346 + $0x18] sm:$0xff]
        %v616 = vld [vmem:[%s346 + $0x20] sm:$0xff]
        %v617 = vld [vmem:[%s346 + $0x28] sm:$0xff]
        %v618 = vld [vmem:[%s346 + $0x30] sm:$0xff]
        %v619 = vld [vmem:[%s346 + $0x38] sm:$0xff]
        %v620 = vld [vmem:[%s346 + $0x40] sm:$0xff]
        %v621 = vld [vmem:[%s346 + $0x48] sm:$0xff]
        %v622 = vld [vmem:[%s346 + $0x50] sm:$0xff]
        %v623 = vld [vmem:[%s346 + $0x58] sm:$0xff]
        %v624 = vld [vmem:[%s346 + $0x60] sm:$0xff]
        %v625 = vld [vmem:[%s346 + $0x68] sm:$0xff]
        %v626 = vld [vmem:[%s346 + $0x70] sm:$0xff]
        %v627 = vld [vmem:[%s346 + $0x78] sm:$0xff]
        %v628 = vld [vmem:[%s346 + $0x80] sm:$0xff]
        %v629 = vld [vmem:[%s346 + $0x88] sm:$0xff]
        %v630 = vld [vmem:[%s346 + $0x90] sm:$0xff]
        %v631 = vld [vmem:[%s346 + $0x98] sm:$0xff]
        %v632 = vld [vmem:[%s346 + $0xa0] sm:$0xff]
        %v633 = vld [vmem:[%s346 + $0xa8] sm:$0xff]
        %v634 = vld [vmem:[%s346 + $0xb0] sm:$0xff]
        %v635 = vld [vmem:[%s346 + $0xb8] sm:$0xff]
        %v636 = vld [vmem:[%s346 + $0xc0] sm:$0xff]
        %v637 = vld [vmem:[%s346 + $0xc8] sm:$0xff]
        %v638 = vld [vmem:[%s346 + $0xd0] sm:$0xff]
        %v639 = vld [vmem:[%s346 + $0xd8] sm:$0xff]
        %v640 = vld [vmem:[%s346 + $0xe0] sm:$0xff]
        %v641 = vld [vmem:[%s346 + $0xe8] sm:$0xff]
        %v642 = vld [vmem:[%s346 + $0xf0] sm:$0xff]
        %v643 = vld [vmem:[%s346 + $0xf8] sm:$0xff]
        %v644 = vld [vmem:[%s6] sm:$0xff]
        %v645 = vld [vmem:[%s6 + $0x8] sm:$0xff]
        %v646 = vld [vmem:[%s6 + $0x10] sm:$0xff]
        %v647 = vld [vmem:[%s6 + $0x18] sm:$0xff]
        %v648 = vld [vmem:[%s6 + $0x20] sm:$0xff]
        %v649 = vld [vmem:[%s6 + $0x28] sm:$0xff]
        %v650 = vld [vmem:[%s6 + $0x30] sm:$0xff]
        %v651 = vld [vmem:[%s6 + $0x38] sm:$0xff]
        %653 = vset.pattern.permute.xlu0 0
        %654 = vperm.xlu0 %653, %v644
        %v655 = vpop.permute.xlu0 %654
        %658 = vset.pattern.permute.xlu0 0
        %659 = vperm.xlu0 %658, %v645
        %v660 = vpop.permute.xlu0 %659
        %663 = vset.pattern.permute.xlu0 0
        %664 = vperm.xlu0 %663, %v646
        %v665 = vpop.permute.xlu0 %664
        %668 = vset.pattern.permute.xlu0 0
        %669 = vperm.xlu0 %668, %v647
        %v670 = vpop.permute.xlu0 %669
        %673 = vset.pattern.permute.xlu0 0
        %674 = vperm.xlu0 %673, %v648
        %v675 = vpop.permute.xlu0 %674
        %678 = vset.pattern.permute.xlu0 0
        %679 = vperm.xlu0 %678, %v649
        %v680 = vpop.permute.xlu0 %679
        %683 = vset.pattern.permute.xlu0 0
        %684 = vperm.xlu0 %683, %v650
        %v685 = vpop.permute.xlu0 %684
        %688 = vset.pattern.permute.xlu0 0
        %689 = vperm.xlu0 %688, %v651
        %v690 = vpop.permute.xlu0 %689
        %692 = vmatprep.subr.mxu0 0.0
        %693 = vmatpush1.msra.mxu0 %v612
        %694 = vmatprep.subr.mxu0 0.0
        %695 = vmatpush1.msra.mxu0 %v613
        %696 = vmatprep.subr.mxu0 0.0
        %697 = vmatpush1.msra.mxu0 %v614
        %698 = vmatprep.subr.mxu0 0.0
        %699 = vmatpush1.msra.mxu0 %v615
        %700 = vmatprep.subr.mxu0 0.0
        %701 = vmatpush1.msra.mxu0 %v616
        %702 = vmatprep.subr.mxu0 0.0
        %703 = vmatpush1.msra.mxu0 %v617
        %704 = vmatprep.subr.mxu0 0.0
        %705 = vmatpush1.msra.mxu0 %v618
        %706 = vmatprep.subr.mxu0 0.0
        %707 = vmatpush1.msra.mxu0 %v619
        %708 = vmatprep.subr.mxu0 0.0
        %709 = vmatpush1.msra.mxu0 %v620
        %710 = vmatprep.subr.mxu0 0.0
        %711 = vmatpush1.msra.mxu0 %v621
        %712 = vmatprep.subr.mxu0 0.0
        %713 = vmatpush1.msra.mxu0 %v622
        %714 = vmatprep.subr.mxu0 0.0
        %715 = vmatpush1.msra.mxu0 %v623
        %716 = vmatprep.subr.mxu0 0.0
        %717 = vmatpush1.msra.mxu0 %v624
        %718 = vmatprep.subr.mxu0 0.0
        %719 = vmatpush1.msra.mxu0 %v625
        %720 = vmatprep.subr.mxu0 0.0
        %721 = vmatpush1.msra.mxu0 %v626
        %722 = vmatprep.subr.mxu0 0.0
        %723 = vmatpush1.msra.mxu0 %v627
        %724 = vmatprep.subr.mxu0 0.0
        %725 = vmatpush1.msra.mxu0 %v628
        %726 = vmatprep.subr.mxu0 0.0
        %727 = vmatpush1.msra.mxu0 %v629
        %728 = vmatprep.subr.mxu0 0.0
        %729 = vmatpush1.msra.mxu0 %v630
        %730 = vmatprep.subr.mxu0 0.0
        %731 = vmatpush1.msra.mxu0 %v631
        %732 = vmatprep.subr.mxu0 0.0
        %733 = vmatpush1.msra.mxu0 %v632
        %734 = vmatprep.subr.mxu0 0.0
        %735 = vmatpush1.msra.mxu0 %v633
        %736 = vmatprep.subr.mxu0 0.0
        %737 = vmatpush1.msra.mxu0 %v634
        %738 = vmatprep.subr.mxu0 0.0
        %739 = vmatpush1.msra.mxu0 %v635
        %740 = vmatprep.subr.mxu0 0.0
        %741 = vmatpush1.msra.mxu0 %v636
        %742 = vmatprep.subr.mxu0 0.0
        %743 = vmatpush1.msra.mxu0 %v637
        %744 = vmatprep.subr.mxu0 0.0
        %745 = vmatpush1.msra.mxu0 %v638
        %746 = vmatprep.subr.mxu0 0.0
        %747 = vmatpush1.msra.mxu0 %v639
        %748 = vmatprep.subr.mxu0 0.0
        %749 = vmatpush1.msra.mxu0 %v640
        %750 = vmatprep.subr.mxu0 0.0
        %751 = vmatpush1.msra.mxu0 %v641
        %752 = vmatprep.subr.mxu0 0.0
        %753 = vmatpush1.msra.mxu0 %v642
        %754 = vmatprep.subr.mxu0 0.0
        %755 = vmatpush1.msra.mxu0 %v643
        %756 = vmatprep.mubr.f32.mxu0 %v597
        %757 = vmatmul.mubr.f32.gmra.mrb[0].mxu0 %v596
        %v758 = vpop.f32.mrb[0].mxu0
        %v759 = vadd.f32 %v655, %v758
        %v760 = vpop.f32.mrb[0].mxu0
        %761 = vmatprep.mubr.f32.mxu0 %v599
        %762 = vmatmul.mubr.f32.gmra.mrb[0].mxu0 %v598
        %v763 = vpop.f32.mrb[0].mxu0
        %v764 = vadd.f32 %v660, %v763
        %v765 = vpop.f32.mrb[0].mxu0
        %766 = vmatprep.mubr.f32.mxu0 %v601
        %767 = vmatmul.mubr.f32.gmra.mrb[0].mxu0 %v600
        %v768 = vpop.f32.mrb[0].mxu0
        %v769 = vadd.f32 %v665, %v768
        %v770 = vpop.f32.mrb[0].mxu0
        %771 = vmatprep.mubr.f32.mxu0 %v603
        %772 = vmatmul.mubr.f32.gmra.mrb[0].mxu0 %v602
        %v773 = vpop.f32.mrb[0].mxu0
        %v774 = vadd.f32 %v670, %v773
        %v775 = vpop.f32.mrb[0].mxu0
        %776 = vmatprep.mubr.f32.mxu0 %v605
        %777 = vmatmul.mubr.f32.gmra.mrb[0].mxu0 %v604
        %v778 = vpop.f32.mrb[0].mxu0
        %v779 = vadd.f32 %v675, %v778
        %v780 = vpop.f32.mrb[0].mxu0
        %781 = vmatprep.mubr.f32.mxu0 %v607
        %782 = vmatmul.mubr.f32.gmra.mrb[0].mxu0 %v606
        %v783 = vpop.f32.mrb[0].mxu0
        %v784 = vadd.f32 %v680, %v783
        %v785 = vpop.f32.mrb[0].mxu0
        %786 = vmatprep.mubr.f32.mxu0 %v609
        %787 = vmatmul.mubr.f32.gmra.mrb[0].mxu0 %v608
        %v788 = vpop.f32.mrb[0].mxu0
        %v789 = vadd.f32 %v685, %v788
        %v790 = vpop.f32.mrb[0].mxu0
        %791 = vmatprep.mubr.f32.mxu0 %v611
        %792 = vmatmul.mubr.f32.gmra.mrb[0].mxu0 %v610
        %v793 = vpop.f32.mrb[0].mxu0
        %v794 = vadd.f32 %v690, %v793
        %v795 = vpop.f32.mrb[0].mxu0
        %796 = vdwg.mxu0
        %vm797 = vcmask 261120
        %798 = vst.msk [vmem:[%s331 + $0x28] sm:$0xff] %vm797, %v759
        %799 = vst.msk [vmem:[%s331 + $0x58] sm:$0xff] %vm797, %v764
        %800 = vst.msk [vmem:[%s331 + $0x88] sm:$0xff] %vm797, %v769
        %801 = vst.msk [vmem:[%s331 + $0xb8] sm:$0xff] %vm797, %v774
        %802 = vst.msk [vmem:[%s331 + $0xe8] sm:$0xff] %vm797, %v779
        %803 = vst.msk [vmem:[%s331 + $0x118] sm:$0xff] %vm797, %v784
        %804 = vst.msk [vmem:[%s331 + $0x148] sm:$0xff] %vm797, %v789
        %805 = vst.msk [vmem:[%s331 + $0x178] sm:$0xff] %vm797, %v794
        %s806 = sand.u32 %s193, 1
        %s807 = scalar_lea.sflag [#allocation4], %s806
        %s808 = sand.u32 %s193, 1
        %s809 = smul.addr %s808, 384
        %s810 = scalar_lea.vmem [#allocation7], %s809
        // Predicated region
        $region57: #{tpu_custom_call.1} parent=47 // pred_check
          %p811 = pneg %p203
        $region58: #{tpu_custom_call.1} parent=47 // pred_check_branch
          %813 = sbr.rel (%p811) target = $region60
        $region59: #{tpu_custom_call.1} parent=47 // pred_region
          %s815 = ssub.s32 6144, 6144
          %816 = vsyncadd %s807, %s815
          %s817 = smul.addr %s23, 48
          %s818 = smul.addr %s817, 128
          %s819 = scalar_lea.hbm %s7, %s818
          %s820 = sshll.u32 %s810, 4
          %s821 = int_to_ptr.vmem [resolvable:$true] %s820
          %826 = dma.vmem_to_hbm [thread:$0]  %s821, 6144, %s819, %s807, 768, 768, 48
        $region60: #{tpu_custom_call.1} parent=47 // pred_fallthru
          _
      $region48: #{tpu_custom_call.1} parent=5 // pred_fallthru
        _
      %p827 = scmp.le.s32.totalorder 2, %s18
      // Predicated region
      $region61: #{tpu_custom_call.1} parent=5 // pred_check
        %p828 = pneg %p827
      $region62: #{tpu_custom_call.1} parent=5 // pred_check_branch
        %830 = sbr.rel (%p828) target = $region64
      $region63: #{tpu_custom_call.1} parent=5 // pred_region
        %s831 = ssub.s32 %s18, 2
        // Predicated region
        $region65: #{tpu_custom_call.1} parent=63 // pred_check
          %p832 = pneg %p209
        $region66: #{tpu_custom_call.1} parent=63 // pred_check_branch
          %834 = sbr.rel (%p832) target = $region68
        $region67: #{tpu_custom_call.1} parent=63 // pred_region
          %s835 = sand.u32 %s194, 1
          %s836 = scalar_lea.sflag [#allocation4], %s835
          %s837 = sand.u32 %s194, 1
          %s838 = smul.addr %s837, 384
          %s839 = scalar_lea.vmem [#allocation7], %s838
          %840 = dma.done %s836, 6144
        $region68: #{tpu_custom_call.1} parent=63 // pred_fallthru
          _
      $region64: #{tpu_custom_call.1} parent=5 // pred_fallthru
        _
    $region6: #{tpu_custom_call.1} parent=1 // loop_footer
      %s22 = sadd.s32 1, %s18
    $region7: #{tpu_custom_call.1} parent=1 // loop_footer_branch
      %17 = sbr.rel target = $region3
    $region8: #{tpu_custom_call.1} parent=1 // loop_exit
      _
    %841 = vsyncpa [#allocation3], 1
    %s842 = scalar_lea.sflag [#allocation3], 1
    %843 = vsyncpa %s842, 1
    %844 = vsyncpa [#allocation6], 1
    %845 = vsyncpa [#allocation4], 1
    %s846 = scalar_lea.sflag [#allocation4], 1
    %847 = vsyncpa %s846, 1

</llo_original>
